<compile_context>
chip_gen: v7x
topology: tpu7x:2x2x1
jax: 0.10.0
libtpu: 0.0.40
codegen_flags: <defaults>
</compile_context>

<pallas_src>
import functools

import jax
import jax.numpy as jnp
from jax.experimental import pallas as pl
from jax.experimental.pallas import tpu as pltpu


def _rmsnorm_kernel(x_ref, o_ref, *, eps: float, inv_h: float):
    # x_ref / o_ref: (tr, H) tile in VMEM.
    x = x_ref[...]
    xf = x.astype(jnp.float32)
    # sum * (1/H) instead of mean: 1/H is a compile-time constant.
    mean_sq = jnp.sum(xf * xf, axis=-1, keepdims=True) * inv_h   # f32 accumulation
    inv_rms = jax.lax.rsqrt(mean_sq + eps)                       # EUP rsqrt
    # Final scale in the I/O dtype: avoids materializing a full f32 output tile.
    o_ref[...] = x * inv_rms.astype(o_ref.dtype)


def _round_up(x: int, m: int) -> int:
    return ((x + m - 1) // m) * m


def _vmem_budget_and_limit() -> tuple[int, int]:
    """Generation-aware (tile budget, scoped VMEM limit) in bytes."""
    try:
        cap = int(pltpu.get_tpu_info().vmem_capacity_bytes)
    except Exception:
        cap = 64 * 1024 * 1024  # conservative: v7x per-TensorCore VMEM
    # ~96 MiB limit on 128 MiB parts (v5e/v6e), ~48 MiB on 64 MiB parts (v7x).
    limit = min(int(cap * 0.75), cap - (8 << 20))
    budget = limit - (4 << 20)  # headroom for compiler-internal scratch
    return budget, limit


def _choose_tile_rows(R: int, H: int, dtype_bytes: int, vmem_budget: int) -> int:
    """Largest sublane-aligned row tile whose full per-step VMEM cost fits."""
    # Sublane granule: 8 rows for 4-byte dtypes, 16 for bf16, 32 for 1-byte.
    sublane = 8 * max(1, 4 // dtype_bytes)

    # Per-row VMEM cost of one grid step:
    #   4 * H * dtype_bytes : double-buffered input + output pipeline buffers
    #   2 * H * 4           : conservative allowance for in-kernel f32 temps
    bytes_per_row = 4 * H * dtype_bytes + 2 * H * 4
    max_tr = max(sublane, (vmem_budget // bytes_per_row) // sublane * sublane)
    tr = min(max_tr, _round_up(R, sublane))

    # If a big problem collapses to only a couple of grid steps, trade a little
    # tile size for more steps (megacore balance); never drop below 512 rows
    # so per-step pipeline overhead (~0.35 us) stays amortized.
    MIN_STEPS, MIN_TR = 8, 512
    if tr > MIN_TR and pl.cdiv(R, tr) < MIN_STEPS:
        tr_balanced = _round_up(pl.cdiv(R, MIN_STEPS), sublane)
        tr = max(MIN_TR, min(tr, tr_balanced))

    # v7x splits "parallel" grid axes across 2 TensorCores: prefer an even
    # step count so neither core gets a lone extra tile (harmless on 1-TC chips).
    steps = pl.cdiv(R, tr)
    if steps > 1 and steps % 2 == 1:
        tr_even = max(sublane, _round_up(pl.cdiv(R, steps + 1), sublane))
        if pl.cdiv(R, tr_even) % 2 == 0:
            tr = tr_even
    return tr


def rms_norm(x: jax.Array, eps: float) -> jax.Array:
    """RMSNorm over the last axis of x; matches the PyTorch module forward."""
    orig_shape = x.shape
    H = orig_shape[-1]
    x2d = x.reshape(-1, H)
    R = x2d.shape[0]

    dtype_bytes = jnp.dtype(x.dtype).itemsize
    vmem_budget, vmem_limit = _vmem_budget_and_limit()
    tr = _choose_tile_rows(R, H, dtype_bytes, vmem_budget)

    # Ragged last block: no host-side padding.  Out-of-bounds tail rows are
    # read as undefined data, normalized per-row (strictly independent), and
    # their writes are masked away — the output is exactly (R, H).
    grid = (pl.cdiv(R, tr),)

    out = pl.pallas_call(
        functools.partial(_rmsnorm_kernel, eps=float(eps), inv_h=1.0 / H),
        out_shape=jax.ShapeDtypeStruct((R, H), x.dtype),
        grid_spec=pl.GridSpec(
            grid=grid,
            in_specs=[pl.BlockSpec((tr, H), lambda i: (i, 0))],
            out_specs=pl.BlockSpec((tr, H), lambda i: (i, 0)),
        ),
        compiler_params=pltpu.CompilerParams(
            dimension_semantics=("parallel",),
            # Default scoped VMEM limit (16 MiB v5e / 32 MiB v6e+v7x) is below
            # the tile budget; raise it, generation-aware.
            vmem_limit_bytes=vmem_limit,
        ),
    )(x2d)

    return out.reshape(orig_shape)


if __name__ == "__main__":
    eps = 1e-6
    key = jax.random.PRNGKey(0)

    # Small test shape consistent with the module: batch=2, seq=8, hidden=32.
    # (Real models should use H % 128 == 0 for lane-dense stores.)
    x = jax.random.normal(key, (2, 8, 32), dtype=jnp.float32)
    y = jax.block_until_ready(rms_norm(x, eps))
    ref = x / jnp.sqrt(jnp.mean(x * x, axis=-1, keepdims=True) + eps)
    assert jnp.allclose(y, ref, atol=1e-5, rtol=1e-5), "mismatch vs reference"

    # Extra check: row count not a multiple of the sublane/tile (ragged block).
    x2 = jax.random.normal(jax.random.PRNGKey(1), (3, 5, 32), dtype=jnp.float32)
    y2 = jax.block_until_ready(rms_norm(x2, eps))
    ref2 = x2 / jnp.sqrt(jnp.mean(x2 * x2, axis=-1, keepdims=True) + eps)
    assert jnp.allclose(y2, ref2, atol=1e-5, rtol=1e-5), "ragged mismatch"

    print("KERNEL_OK")
</pallas_src>

<mosaic_0001>
module attributes {stable_mosaic.version = 11 : i64} {
  func.func @_rmsnorm_kernel(%arg0: i32, %arg1: memref<16x32xf32, #tpu.memory_space<vmem>>, %arg2: memref<16x32xf32, #tpu.memory_space<vmem>>) attributes {dimension_semantics = [#tpu.dimension_semantics<parallel>], iteration_bounds = array<i64: 1>, scalar_prefetch = 0 : i64, scratch_operands = 0 : i64, tpu.core_type = #tpu.core_type<tc>, window_params = [{transform_indices = @transform_0, window_bounds = array<i64: 16, 32>}, {transform_indices = @transform_1, window_bounds = array<i64: 16, 32>}]} {
    %c0 = arith.constant 0 : index
    %c0_0 = arith.constant 0 : index
    %0 = vector.load %arg1[%c0, %c0_0] : memref<16x32xf32, #tpu.memory_space<vmem>>, vector<16x32xf32>
    %1 = arith.mulf %0, %0 : vector<16x32xf32>
    %cst = arith.constant dense<0.000000e+00> : vector<16xf32>
    %2 = vector.multi_reduction <add>, %1, %cst [1] : vector<16x32xf32> to vector<16xf32>
    %3 = vector.shape_cast %2 : vector<16xf32> to vector<16x1xf32>
    %cst_1 = arith.constant 3.125000e-02 : f32
    %4 = vector.broadcast %cst_1 : f32 to vector<16x1xf32>
    %5 = arith.mulf %3, %4 : vector<16x1xf32>
    %cst_2 = arith.constant 9.99999997E-7 : f32
    %6 = vector.broadcast %cst_2 : f32 to vector<16x1xf32>
    %7 = arith.addf %5, %6 : vector<16x1xf32>
    %8 = math.rsqrt %7 : vector<16x1xf32>
    %9 = vector.broadcast %8 : vector<16x1xf32> to vector<16x32xf32>
    %10 = arith.mulf %0, %9 : vector<16x32xf32>
    %c0_3 = arith.constant 0 : index
    %c0_4 = arith.constant 0 : index
    %11 = vector.load %arg2[%c0_3, %c0_4] : memref<16x32xf32, #tpu.memory_space<vmem>>, vector<16x32xf32>
    tpu.vector_store %arg2[%c0_3, %c0_4], %10 {strides = array<i32>} : memref<16x32xf32, #tpu.memory_space<vmem>>, vector<16x32xf32>,
    return
  }
  func.func @transform_0(%arg0: i32) -> (i32, i32) {
    %c0_i32 = arith.constant 0 : i32
    %c0_i32_0 = arith.constant 0 : i32
    return %arg0, %c0_i32 : i32, i32
  }
  func.func @transform_1(%arg0: i32) -> (i32, i32) {
    %c0_i32 = arith.constant 0 : i32
    %c0_i32_0 = arith.constant 0 : i32
    return %arg0, %c0_i32 : i32, i32
  }
}

</mosaic_0001>

<llo_original>
// kernel: tpu_custom_call.1
$region0: #{tpu_custom_call.1}
  #allocation0 [shape = 'u32[]', space=smem, size = 0x4, offset = 0x4, fixed_abs, tag = 'smem constant byte address 0x4 - core index']
  #allocation1 [shape = 'u32[144,128]{1,0:T(1,128)}', space=vmem, size = 0x12000, scoped, tag = 'internal scratch']
  %s0 = inlined_call_operand.hbm [shape: f32[16,32], index: 0, kind: input, shape index: {}]
  %s1 = inlined_call_operand.hbm [shape: f32[16,32], index: 1, kind: output, shape index: {}]
  %s2 = sld [smem:[#allocation0]]
  $region18: #{tpu_custom_call.1} parent=0
    _
  %s4 = ssub.s32 1, %s2
  %s5 = scalar_select 0, %s4, %s2
  $region1: #{tpu_custom_call.1} parent=0
    #allocation2 [shape = 'u8[8192]{0}', space=vmem, size = 0x2000, scoped, tag = 'input window, operand 0, single buffered']
    #allocation3 [shape = 's32[1]{0}', space=sflag, size = 0x4, scoped, tag = 'scoped memory for tpu_custom_call.1']
    #allocation4 [shape = 's32[1]{0}', space=sflag, size = 0x4, scoped, tag = 'scoped memory for tpu_custom_call.1']
    #allocation5 [shape = 'u8[8192]{0}', space=vmem, size = 0x2000, scoped, tag = 'output window, operand 0, single buffered']
    %6 = vsyncpa [#allocation3], 0
    %7 = vsyncpa [#allocation4], 0
    // Predicated region
    $region2: #{tpu_custom_call.1} parent=1 // pred_check
      _
    $region3: #{tpu_custom_call.1} parent=1 // pred_check_branch
      %9 = sbr.rel (0) target = $region5
    $region4: #{tpu_custom_call.1} parent=1 // pred_region
      %s11 = ssub.s32 256, 256
      %12 = vsyncadd [#allocation3], %s11
      %s13 = sshll.u32 [#allocation2], 4
      %s14 = int_to_ptr.vmem [resolvable:$true] %s13
      %19 = dma.hbm_to_vmem [thread:$0]  %s0, 256, %s14, [#allocation3], 128, 128, 8
    $region5: #{tpu_custom_call.1} parent=1 // pred_fallthru
      _
    // Predicated region
    $region6: #{tpu_custom_call.1} parent=1 // pred_check
      _
    $region7: #{tpu_custom_call.1} parent=1 // pred_check_branch
      %21 = sbr.rel (0) target = $region9
    $region8: #{tpu_custom_call.1} parent=1 // pred_region
      %22 = dma.done [#allocation3], 256
    $region9: #{tpu_custom_call.1} parent=1 // pred_fallthru
      _
    %v23 = vld [vmem:[#allocation2] sm:$0xff]
    %v24 = vld [vmem:[#allocation2 + $0x8] sm:$0xff]
    %v25 = vmul.f32 %v23, %v23
    %v26 = vmul.f32 %v24, %v24
    %vm27 = vcmask 261120
    %v28 = vsel %vm27, %v25, 0.0
    %29 = vadd.xlane.f32.xlu0 %v28
    %v30 = vpop.xlane.xlu0 %29
    %v31 = vsel %vm27, %v26, 0.0
    %32 = vadd.xlane.f32.xlu0 %v31
    %v33 = vpop.xlane.xlu0 %32
    %v34 = vmul.f32 %v30, 0.03125
    %v35 = vmul.f32 %v33, 0.03125
    %v36 = vadd.f32 %v34, 1e-06
    %v37 = vadd.f32 %v35, 1e-06
    %v38 = vrsqrt.pop %v36
    %v39 = vrsqrt.pop %v37
    %v40 = vmul.f32 %v23, %v38
    %v41 = vmul.f32 %v24, %v39
    %42 = vst.msk [vmem:[#allocation5] sm:$0xff] %vm27, %v40
    %43 = vst.msk [vmem:[#allocation5 + $0x8] sm:$0xff] %vm27, %v41
    // Predicated region
    $region10: #{tpu_custom_call.1} parent=1 // pred_check
      _
    $region11: #{tpu_custom_call.1} parent=1 // pred_check_branch
      %45 = sbr.rel (0) target = $region13
    $region12: #{tpu_custom_call.1} parent=1 // pred_region
      %s47 = ssub.s32 256, 256
      %48 = vsyncadd [#allocation4], %s47
      %s49 = sshll.u32 [#allocation5], 4
      %s50 = int_to_ptr.vmem [resolvable:$true] %s49
      %55 = dma.vmem_to_hbm [thread:$0]  %s50, 256, %s1, [#allocation4], 128, 128, 8
    $region13: #{tpu_custom_call.1} parent=1 // pred_fallthru
      _
    // Predicated region
    $region14: #{tpu_custom_call.1} parent=1 // pred_check
      _
    $region15: #{tpu_custom_call.1} parent=1 // pred_check_branch
      %57 = sbr.rel (0) target = $region17
    $region16: #{tpu_custom_call.1} parent=1 // pred_region
      %58 = dma.done [#allocation4], 256
    $region17: #{tpu_custom_call.1} parent=1 // pred_fallthru
      _
    %59 = vsyncpa [#allocation3], 1
    %60 = vsyncpa [#allocation4], 1

</llo_original>
